<compile_context>
chip_gen: v5e
topology: v5e:2x2
jax: 0.10.0
libtpu: 0.0.40
codegen_flags: <defaults>
</compile_context>

<pallas_src>
import jax
import jax.numpy as jnp
from jax.experimental import pallas as pl
from jax.experimental.pallas import tpu as pltpu


def _round_up(x, m):
    return (x + m - 1) // m * m


def _pick_tile_n(N, B, tile_n):
    """Pick a patch-row tile TN (multiple of 8, or == full N) and padded N."""
    if N <= tile_n:
        TN = N                       # full-extent block dim: exempt from 8-div rule
    else:
        TN = 0
        cand = (tile_n // 8) * 8
        while cand >= 8:             # largest multiple-of-8 divisor of N <= tile_n
            if N % cand == 0:
                TN = cand
                break
            cand -= 8
        if TN == 0:                  # rare fallback: pad N (one extra copy pass)
            TN = (tile_n // 8) * 8
    N_pad = _round_up(N, TN)
    # v7x has 2 TensorCores: make sure the parallel grid has >= 2 points.
    if B * (N_pad // TN) < 2 and TN % 16 == 0:
        TN //= 2
    return TN, N_pad


# ----------------------------- Pallas kernel ------------------------------
def _embed_kernel(patch_ref, w_ref, pos_ref, out_ref):
    # patch_ref: (TN, K) bf16   w_ref: (K, E) bf16 (VMEM-resident)
    # pos_ref:   (TN, E) bf16   out_ref: (TN, E) bf16
    acc = jnp.dot(patch_ref[...], w_ref[...],
                  preferred_element_type=jnp.float32)          # MXU, f32 acc
    out_ref[...] = (acc + pos_ref[...].astype(jnp.float32)).astype(out_ref.dtype)


def siglip_vision_embeddings(pixel_values, conv_weight, conv_bias, pos_embedding,
                             patch_size, *, tile_n=256, out_dtype=jnp.bfloat16):
    """
    pixel_values : [B, C, H, W]   (NCHW, like PyTorch)
    conv_weight  : [E, C, P, P]   (PyTorch Conv2d weight layout)
    conv_bias    : [E]
    pos_embedding: [N, E]  with N = (H//P)*(W//P)
    returns      : [B, N, E]  in `out_dtype` (default bf16)
    """
    B, C, H, W = pixel_values.shape
    E = conv_weight.shape[0]
    P = patch_size
    gh, gw = H // P, W // P
    N = gh * gw
    K = C * P * P

    TN, N_pad = _pick_tile_n(N, B, tile_n)
    n_tiles = N_pad // TN

    # ----- glue: extract non-overlapping patches (bf16, single fused pass) ---
    # x[b, c, i*P+ph, j*P+pw] -> patches[b, i*gw+j, c*P*P + ph*P + pw]
    # TODO(synk): fold patch extraction into the kernel (strip BlockSpec over
    # pixel rows + in-kernel XLU rearrange) to drop this XLA transpose pass too.
    x = pixel_values.astype(jnp.bfloat16).reshape(B, C, gh, P, gw, P)
    x = jnp.transpose(x, (0, 2, 4, 1, 3, 5))        # [B, gh, gw, C, P, P]
    patches = x.reshape(B, N, K)                    # no K pad (full-dim block)
    if N_pad != N:
        patches = jnp.pad(patches, ((0, 0), (0, N_pad - N), (0, 0)))

    # conv weight [E, C, P, P] -> [K, E] (matching the (c, ph, pw) flatten
    # order), bf16, unpadded.
    w_mat = conv_weight.reshape(E, K).T.astype(jnp.bfloat16)    # [K, E]

    # Fold the conv bias into the positional embedding (one add in-kernel);
    # store the table in bf16 -- the add happens in f32 inside the kernel.
    pos_plus = (pos_embedding.astype(jnp.float32)
                + conv_bias.astype(jnp.float32)[None, :]).astype(jnp.bfloat16)
    if N_pad != N:
        pos_plus = jnp.pad(pos_plus, ((0, N_pad - N), (0, 0)))

    out = pl.pallas_call(
        _embed_kernel,
        out_shape=jax.ShapeDtypeStruct((B, N_pad, E), out_dtype),
        grid_spec=pltpu.PrefetchScalarGridSpec(
            num_scalar_prefetch=0,
            # Batch is the innermost (fastest) grid axis: the pos tile only
            # changes on the outer axis and the weight never changes, so both
            # stay VMEM-resident while b varies (no per-batch re-DMA).
            grid=(n_tiles, B),
            in_specs=[
                pl.BlockSpec((pl.Squeezed(), TN, K), lambda n, b: (b, n, 0)),  # patches
                pl.BlockSpec((K, E), lambda n, b: (0, 0)),                     # weight (resident)
                pl.BlockSpec((TN, E), lambda n, b: (n, 0)),                    # pos + bias (per n-tile)
            ],
            out_specs=pl.BlockSpec((pl.Squeezed(), TN, E),
                                   lambda n, b: (b, n, 0)),
        ),
        compiler_params=pltpu.CompilerParams(
            dimension_semantics=("parallel", "parallel")),
    )(patches, w_mat, pos_plus)

    if N_pad != N:
        out = out[:, :N, :]
    return out


# ------------------------------- reference --------------------------------
def _reference(pixel_values, conv_weight, conv_bias, pos_embedding, patch_size):
    # Conv2d(stride=kernel=P, padding='valid') in NCHW, then flatten + transpose.
    out = jax.lax.conv_general_dilated(
        pixel_values, conv_weight,
        window_strides=(patch_size, patch_size),
        padding="VALID",
        dimension_numbers=("NCHW", "OIHW", "NCHW"))
    out = out + conv_bias[None, :, None, None]
    B, E, gh, gw = out.shape
    out = out.reshape(B, E, gh * gw).transpose(0, 2, 1)   # [B, N, E]
    return out + pos_embedding[None]


# --------------------------------- main ------------------------------------
if __name__ == "__main__":
    # Small config consistent with the module: image=16, patch=4 -> 16 patches.
    # E=128 keeps the output lane-dense (a toy E=32 config is lane-sparse).
    B, C, IMG, P, E = 2, 3, 16, 4, 128
    N = (IMG // P) ** 2

    key = jax.random.PRNGKey(0)
    k1, k2, k3, k4 = jax.random.split(key, 4)
    pixel_values = jax.random.normal(k1, (B, C, IMG, IMG), jnp.float32)
    conv_weight = jax.random.normal(k2, (E, C, P, P), jnp.float32) * 0.02
    conv_bias = jax.random.normal(k3, (E,), jnp.float32) * 0.02
    pos_embedding = jax.random.normal(k4, (N, E), jnp.float32) * 0.02

    out = siglip_vision_embeddings(pixel_values, conv_weight, conv_bias,
                                   pos_embedding, P)
    out = jax.block_until_ready(out)

    ref = _reference(pixel_values, conv_weight, conv_bias, pos_embedding, P)
    assert out.shape == (B, N, E), out.shape
    assert out.dtype == jnp.bfloat16, out.dtype
    # bf16 matmul operands + bf16 output vs. the f32 conv reference.
    err = float(jnp.max(jnp.abs(out.astype(jnp.float32) - ref)))
    assert err < 2e-2, f"mismatch vs reference: max abs err {err}"

    print("KERNEL_OK")
</pallas_src>

<mosaic_0001>
module attributes {stable_mosaic.version = 11 : i64} {
  func.func @_embed_kernel(%arg0: i32, %arg1: i32, %arg2: memref<1x16x48xbf16, #tpu.memory_space<vmem>>, %arg3: memref<48x128xbf16, #tpu.memory_space<vmem>>, %arg4: memref<16x128xbf16, #tpu.memory_space<vmem>>, %arg5: memref<1x16x128xbf16, #tpu.memory_space<vmem>>) attributes {dimension_semantics = [#tpu.dimension_semantics<parallel>, #tpu.dimension_semantics<parallel>], iteration_bounds = array<i64: 1, 2>, scalar_prefetch = 0 : i64, scratch_operands = 0 : i64, tpu.core_type = #tpu.core_type<tc>, window_params = [{transform_indices = @transform_0, window_bounds = array<i64: 1, 16, 48>}, {pipeline_mode = #tpu.pipeline_mode<synchronous>, transform_indices = @transform_1, window_bounds = array<i64: 48, 128>}, {transform_indices = @transform_2, window_bounds = array<i64: 16, 128>}, {transform_indices = @transform_3, window_bounds = array<i64: 1, 16, 128>}]} {
    %c0 = arith.constant 0 : index
    %c0_0 = arith.constant 0 : index
    %c0_1 = arith.constant 0 : index
    %0 = vector.load %arg2[%c0, %c0_0, %c0_1] : memref<1x16x48xbf16, #tpu.memory_space<vmem>>, vector<1x16x48xbf16>
    %1 = vector.shape_cast %0 : vector<1x16x48xbf16> to vector<16x48xbf16>
    %c0_2 = arith.constant 0 : index
    %c0_3 = arith.constant 0 : index
    %2 = vector.load %arg3[%c0_2, %c0_3] : memref<48x128xbf16, #tpu.memory_space<vmem>>, vector<48x128xbf16>
    %cst = arith.constant dense<0.000000e+00> : vector<16x128xf32>
    %3 = tpu.matmul %1, %2, %cst {dimension_numbers = #tpu.dot_dimension_numbers<[1], [0], [0], [1], [0, 0, 1, 1], [], []>} : vector<16x48xbf16>, vector<48x128xbf16>, vector<16x128xf32> -> vector<16x128xf32>
    %c0_4 = arith.constant 0 : index
    %c0_5 = arith.constant 0 : index
    %4 = vector.load %arg4[%c0_4, %c0_5] : memref<16x128xbf16, #tpu.memory_space<vmem>>, vector<16x128xbf16>
    %5 = arith.extf %4 : vector<16x128xbf16> to vector<16x128xf32>
    %6 = arith.addf %3, %5 : vector<16x128xf32>
    %7 = arith.truncf %6 : vector<16x128xf32> to vector<16x128xbf16>
    %c0_6 = arith.constant 0 : index
    %c0_7 = arith.constant 0 : index
    %c0_8 = arith.constant 0 : index
    %8 = vector.load %arg5[%c0_6, %c0_7, %c0_8] : memref<1x16x128xbf16, #tpu.memory_space<vmem>>, vector<1x16x128xbf16>
    %9 = vector.shape_cast %8 : vector<1x16x128xbf16> to vector<16x128xbf16>
    %10 = vector.shape_cast %7 : vector<16x128xbf16> to vector<1x16x128xbf16>
    tpu.vector_store %arg5[%c0_6, %c0_7, %c0_8], %10 {strides = array<i32>} : memref<1x16x128xbf16, #tpu.memory_space<vmem>>, vector<1x16x128xbf16>,
    return
  }
  func.func @transform_0(%arg0: i32, %arg1: i32) -> (i32, i32, i32) {
    %c0_i32 = arith.constant 0 : i32
    %c0_i32_0 = arith.constant 0 : i32
    return %arg1, %arg0, %c0_i32 : i32, i32, i32
  }
  func.func @transform_1(%arg0: i32, %arg1: i32) -> (i32, i32) {
    %c0_i32 = arith.constant 0 : i32
    %c0_i32_0 = arith.constant 0 : i32
    %c0_i32_1 = arith.constant 0 : i32
    return %c0_i32, %c0_i32_0 : i32, i32
  }
  func.func @transform_2(%arg0: i32, %arg1: i32) -> (i32, i32) {
    %c0_i32 = arith.constant 0 : i32
    %c0_i32_0 = arith.constant 0 : i32
    return %arg0, %c0_i32 : i32, i32
  }
  func.func @transform_3(%arg0: i32, %arg1: i32) -> (i32, i32, i32) {
    %c0_i32 = arith.constant 0 : i32
    %c0_i32_0 = arith.constant 0 : i32
    return %arg1, %arg0, %c0_i32 : i32, i32, i32
  }
}

</mosaic_0001>

<llo_original>
// kernel: tpu_custom_call.1
$region0: #{tpu_custom_call.1}
  #allocation0 [shape = 'u32[]', space=smem, size = 0x4, offset = 0x4, fixed_abs, tag = 'smem constant byte address 0x4 - core index']
  #allocation1 [shape = 'u32[72,128]{1,0:T(1,128)}', space=vmem, size = 0x9000, scoped, tag = 'internal scratch']
  %s0 = inlined_call_operand.hbm [shape: bf16[2,16,48], index: 0, kind: input, shape index: {}]
  %s1 = inlined_call_operand.hbm [shape: bf16[48,128], index: 1, kind: input, shape index: {}]
  %s2 = inlined_call_operand.hbm [shape: bf16[16,128], index: 2, kind: input, shape index: {}]
  %s3 = inlined_call_operand.hbm [shape: bf16[2,16,128], index: 3, kind: output, shape index: {}]
  %s4 = sld [smem:[#allocation0]]
  $region57: #{tpu_custom_call.1} parent=0
    _
  %s6 = ssub.s32 1, %s4
  %s7 = scalar_select 0, %s6, %s4
  $region1: #{tpu_custom_call.1} parent=0
    #allocation2 [shape = 'u8[8192]{0}', space=vmem, size = 0x2000, scoped, tag = 'input window, operand 0']
    #allocation3 [shape = 's32[2]{0}', space=sflag, size = 0x8, scoped, tag = 'scoped memory for tpu_custom_call.1']
    #allocation4 [shape = 's32[2]{0}', space=sflag, size = 0x8, scoped, tag = 'scoped memory for tpu_custom_call.1']
    #allocation5 [shape = 'u8[12288]{0}', space=vmem, size = 0x3000, scoped, tag = 'input window, operand 1, single buffered']
    #allocation6 [shape = 's32[1]{0}', space=sflag, size = 0x4, scoped, tag = 'scoped memory for tpu_custom_call.1']
    #allocation7 [shape = 'u8[4096]{0}', space=vmem, size = 0x1000, scoped, tag = 'input window, operand 2, single buffered']
    #allocation8 [shape = 'u8[8192]{0}', space=vmem, size = 0x2000, scoped, tag = 'output window, operand 0']
    %8 = vsyncpa [#allocation3], 0
    %s9 = scalar_lea.sflag [#allocation3], 1
    %10 = vsyncpa %s9, 0
    %11 = vsyncpa [#allocation6], 0
    %12 = vsyncpa [#allocation4], 0
    %s13 = scalar_lea.sflag [#allocation4], 1
    %14 = vsyncpa %s13, 0
    loop: start=0, step=1, limit=4
    $region2: #{tpu_custom_call.1} parent=1 // loop_pre_header
      _
    $region3: #{tpu_custom_call.1} parent=1 // loop_header
      %s16 = sphi 0, %s20
      %p17 = scmp.ge.s32.totalorder %s16, 4
      %s23 = sphi 0, %s35
      %s24 = sphi 0, %s31
      %s25 = sphi 0, %s23
      %s26 = sphi 0, %s24
      %s27 = sphi 0, %s25
      %s28 = sphi 0, %s26
      %s40 = sphi 0, %s42
      %s43 = sphi 0, %s40
      %s44 = sphi 0, %s43
      %s60 = sphi 0, %s44
      %s64 = sphi 0, %s64
      %s66 = sphi 0, %s64
      %s67 = sphi 0, %s66
      %s81 = sphi 0, %s67
      %s87 = sphi 0, %s89
      %s90 = sphi 0, %s87
      %s91 = sphi 0, %s90
      %s107 = sphi 0, %s91
      %s115 = sphi 0, %s117
      %s118 = sphi 0, %s115
      %s119 = sphi 0, %s118
      %s135 = sphi 0, %s119
    $region4: #{tpu_custom_call.1} parent=1 // loop_header_branch
      %19 = sbr.rel (%p17) target = $region8
    $region5: #{tpu_custom_call.1} parent=1 // loop_body
      %s21 = ssub.s32 %s16, 1
      %s22 = ssub.s32 %s16, 2
      %s29 = sadd.s32 1, %s24
      %p30 = scmp.ge.s32.totalorder %s29, 2
      %s31 = scalar_select %p30, 0, %s29
      %s32 = sadd.s32 1, %s23
      %s33 = scalar_select %p30, %s32, %s23
      %p34 = scmp.ge.s32.totalorder %s33, 1
      %s35 = scalar_select %p34, 0, %s33
      %s36 = ssub.s32 %s24, %s31
      %s37 = ssub.s32 %s23, %s35
      %s38 = sor.u32 %s36, %s37
      %p39 = scmp.eq.s32.totalorder %s38, 0
      %s41 = sadd.s32 %s40, 1
      %s42 = scalar_select %p39, %s40, %s41
      %p45 = pneg %p39
      %p46 = scmp.eq.s32.totalorder %s16, 1
      %p47 = por %p45, %p46
      %p48 = scmp.ne.s32.totalorder %s40, %s43
      %p49 = scmp.eq.s32.totalorder %s16, 0
      %p50 = por %p48, %p49
      %p51 = scmp.ne.s32.totalorder %s40, %s43
      %p52 = scmp.eq.s32.totalorder %s21, 1
      %p53 = por %p51, %p52
      %p54 = scmp.ne.s32.totalorder %s43, %s44
      %p55 = scmp.eq.s32.totalorder %s21, 0
      %p56 = por %p54, %p55
      %p57 = scmp.ne.s32.totalorder %s43, %s44
      %p58 = scmp.eq.s32.totalorder %s22, 1
      %p59 = por %p57, %p58
      %p61 = scmp.ne.s32.totalorder %s44, %s60
      %p62 = scmp.eq.s32.totalorder %s22, 0
      %p63 = por %p61, %p62
      %s65 = sadd.s32 %s64, 1
      %p68 = scmp.eq.s32.totalorder %s16, 1
      %p69 = scmp.ne.s32.totalorder %s64, %s66
      %p70 = scmp.eq.s32.totalorder %s16, 0
      %p71 = por %p69, %p70
      %p72 = scmp.ne.s32.totalorder %s64, %s66
      %p73 = scmp.eq.s32.totalorder %s21, 1
      %p74 = por %p72, %p73
      %p75 = scmp.ne.s32.totalorder %s66, %s67
      %p76 = scmp.eq.s32.totalorder %s21, 0
      %p77 = por %p75, %p76
      %p78 = scmp.ne.s32.totalorder %s66, %s67
      %p79 = scmp.eq.s32.totalorder %s22, 1
      %p80 = por %p78, %p79
      %p82 = scmp.ne.s32.totalorder %s67, %s81
      %p83 = scmp.eq.s32.totalorder %s22, 0
      %p84 = por %p82, %p83
      %s85 = ssub.s32 %s23, %s35
      %p86 = scmp.eq.s32.totalorder %s85, 0
      %s88 = sadd.s32 %s87, 1
      %s89 = scalar_select %p86, %s87, %s88
      %p92 = pneg %p86
      %p93 = scmp.eq.s32.totalorder %s16, 1
      %p94 = por %p92, %p93
      %p95 = scmp.ne.s32.totalorder %s87, %s90
      %p96 = scmp.eq.s32.totalorder %s16, 0
      %p97 = por %p95, %p96
      %p98 = scmp.ne.s32.totalorder %s87, %s90
      %p99 = scmp.eq.s32.totalorder %s21, 1
      %p100 = por %p98, %p99
      %p101 = scmp.ne.s32.totalorder %s90, %s91
      %p102 = scmp.eq.s32.totalorder %s21, 0
      %p103 = por %p101, %p102
      %p104 = scmp.ne.s32.totalorder %s90, %s91
      %p105 = scmp.eq.s32.totalorder %s22, 1
      %p106 = por %p104, %p105
      %p108 = scmp.ne.s32.totalorder %s91, %s107
      %p109 = scmp.eq.s32.totalorder %s22, 0
      %p110 = por %p108, %p109
      %s111 = ssub.s32 %s24, %s31
      %s112 = ssub.s32 %s23, %s35
      %s113 = sor.u32 %s111, %s112
      %p114 = scmp.eq.s32.totalorder %s113, 0
      %s116 = sadd.s32 %s115, 1
      %s117 = scalar_select %p114, %s115, %s116
      %p120 = pneg %p114
      %p121 = scmp.eq.s32.totalorder %s16, 1
      %p122 = por %p120, %p121
      %p123 = scmp.ne.s32.totalorder %s115, %s118
      %p124 = scmp.eq.s32.totalorder %s16, 0
      %p125 = por %p123, %p124
      %p126 = scmp.ne.s32.totalorder %s115, %s118
      %p127 = scmp.eq.s32.totalorder %s21, 1
      %p128 = por %p126, %p127
      %p129 = scmp.ne.s32.totalorder %s118, %s119
      %p130 = scmp.eq.s32.totalorder %s21, 0
      %p131 = por %p129, %p130
      %p132 = scmp.ne.s32.totalorder %s118, %s119
      %p133 = scmp.eq.s32.totalorder %s22, 1
      %p134 = por %p132, %p133
      %p136 = scmp.ne.s32.totalorder %s119, %s135
      %p137 = scmp.eq.s32.totalorder %s22, 0
      %p138 = por %p136, %p137
      %p139 = scmp.le.s32.totalorder 1, %s16
      %p140 = scmp.lt.s32.totalorder %s16, 3
      %p141 = pnand %p139, %p140
      %p142 = pneg %p141
      // Predicated region
      $region9: #{tpu_custom_call.1} parent=5 // pred_check
        _
      $region10: #{tpu_custom_call.1} parent=5 // pred_check_branch
        %144 = sbr.rel (%p141) target = $region12
      $region11: #{tpu_custom_call.1} parent=5 // pred_region
        %s145 = ssub.s32 %s16, 1
        // Predicated region
        $region13: #{tpu_custom_call.1} parent=11 // pred_check
          %p146 = pneg %p77
        $region14: #{tpu_custom_call.1} parent=11 // pred_check_branch
          %148 = sbr.rel (%p146) target = $region16
        $region15: #{tpu_custom_call.1} parent=11 // pred_region
          %150 = vsyncadd [#allocation6], 0
          %s151 = sshll.u32 %s1, 4
          %s152 = int_to_ptr.hbm [resolvable:$true] %s151
          %s153 = sshll.u32 [#allocation5], 4
          %s154 = int_to_ptr.vmem [resolvable:$true] %s153
          %159 = dma.hbm_to_vmem [thread:$0]  %s152, 384, %s154, [#allocation6], 64, 64, 4
        $region16: #{tpu_custom_call.1} parent=11 // pred_fallthru
          _
        // Predicated region
        $region17: #{tpu_custom_call.1} parent=11 // pred_check
          %p160 = pneg %p103
        $region18: #{tpu_custom_call.1} parent=11 // pred_check_branch
          %162 = sbr.rel (%p160) target = $region20
        $region19: #{tpu_custom_call.1} parent=11 // pred_region
          %s163 = smul.u32 2, %s25
          %165 = vsyncadd [#allocation6], 0
          %s166 = smul.addr %s163, 4
          %s167 = scalar_lea.hbm %s2, %s166
          %s168 = sshll.u32 %s167, 4
          %s169 = int_to_ptr.hbm [resolvable:$true] %s168
          %s170 = sshll.u32 [#allocation7], 4
          %s171 = int_to_ptr.vmem [resolvable:$true] %s170
          %176 = dma.hbm_to_vmem [thread:$0]  %s169, 128, %s171, [#allocation6], 64, 64, 4
        $region20: #{tpu_custom_call.1} parent=11 // pred_fallthru
          _
      $region12: #{tpu_custom_call.1} parent=5 // pred_fallthru
        _
      %p177 = scmp.lt.s32.totalorder %s16, 2
      // Predicated region
      $region21: #{tpu_custom_call.1} parent=5 // pred_check
        %p178 = pneg %p177
      $region22: #{tpu_custom_call.1} parent=5 // pred_check_branch
        %180 = sbr.rel (%p178) target = $region24
      $region23: #{tpu_custom_call.1} parent=5 // pred_region
        // Predicated region
        $region25: #{tpu_custom_call.1} parent=23 // pred_check
          %p181 = pneg %p50
        $region26: #{tpu_custom_call.1} parent=23 // pred_check_branch
          %183 = sbr.rel (%p181) target = $region28
        $region27: #{tpu_custom_call.1} parent=23 // pred_region
          %s184 = sand.u32 %s40, 1
          %s185 = scalar_lea.sflag [#allocation3], %s184
          %s186 = sand.u32 %s40, 1
          %s187 = smul.addr %s186, 8
          %s188 = scalar_lea.vmem [#allocation2], %s187
          %s189 = smul.u32 2, %s23
          %191 = vsyncadd %s185, 0
          %s192 = smul.addr %s24, 2
          %s193 = sadd.s32 %s189, %s192
          %s194 = smul.addr %s193, 4
          %s195 = scalar_lea.hbm %s0, %s194
          %s196 = sshll.u32 %s195, 4
          %s197 = int_to_ptr.hbm [resolvable:$true] %s196
          %s198 = sshll.u32 %s188, 4
          %s199 = int_to_ptr.vmem [resolvable:$true] %s198
          %204 = dma.hbm_to_vmem [thread:$0]  %s197, 128, %s199, %s185, 64, 64, 4
        $region28: #{tpu_custom_call.1} parent=23 // pred_fallthru
          _
      $region24: #{tpu_custom_call.1} parent=5 // pred_fallthru
        _
      %p205 = scmp.le.s32.totalorder 1, %s16
      %p206 = scmp.lt.s32.totalorder %s16, 3
      %p207 = pnand %p205, %p206
      %p208 = pneg %p207
      // Predicated region
      $region29: #{tpu_custom_call.1} parent=5 // pred_check
        _
      $region30: #{tpu_custom_call.1} parent=5 // pred_check_branch
        %210 = sbr.rel (%p207) target = $region32
      $region31: #{tpu_custom_call.1} parent=5 // pred_region
        %s211 = ssub.s32 %s16, 1
        %s212 = sand.u32 %s43, 1
        %s213 = scalar_lea.sflag [#allocation3], %s212
        %s214 = sand.u32 %s43, 1
        %s215 = smul.addr %s214, 8
        %s216 = scalar_lea.vmem [#allocation2], %s215
        // Predicated region
        $region33: #{tpu_custom_call.1} parent=31 // pred_check
          %p217 = pneg %p56
        $region34: #{tpu_custom_call.1} parent=31 // pred_check_branch
          %219 = sbr.rel (%p217) target = $region36
        $region35: #{tpu_custom_call.1} parent=31 // pred_region
          %221 = dma.done %s213, 128
        $region36: #{tpu_custom_call.1} parent=31 // pred_fallthru
          _
        // Predicated region
        $region37: #{tpu_custom_call.1} parent=31 // pred_check
          %p222 = pneg %p77
        $region38: #{tpu_custom_call.1} parent=31 // pred_check_branch
          %224 = sbr.rel (%p222) target = $region40
        $region39: #{tpu_custom_call.1} parent=31 // pred_region
          %226 = dma.done [#allocation6], 384
        $region40: #{tpu_custom_call.1} parent=31 // pred_fallthru
          _
        // Predicated region
        $region41: #{tpu_custom_call.1} parent=31 // pred_check
          %p227 = pneg %p103
        $region42: #{tpu_custom_call.1} parent=31 // pred_check_branch
          %229 = sbr.rel (%p227) target = $region44
        $region43: #{tpu_custom_call.1} parent=31 // pred_region
          %231 = dma.done [#allocation6], 128
        $region44: #{tpu_custom_call.1} parent=31 // pred_fallthru
          _
        %s232 = sand.u32 %s43, 1
        %s233 = scalar_lea.sflag [#allocation3], %s232
        %s234 = sand.u32 %s43, 1
        %s235 = smul.addr %s234, 8
        %s236 = scalar_lea.vmem [#allocation2], %s235
        %p237 = pneg %p56
        %p238 = pneg %p53
        %p239 = pneg %p77
        %p240 = pneg %p74
        %p241 = pneg %p103
        %p242 = pneg %p100
        %p243 = pneg %p131
        %p244 = pneg %p128
        %s245 = sand.u32 %s118, 1
        %s246 = scalar_lea.sflag [#allocation4], %s245
        %s247 = sand.u32 %s118, 1
        %s248 = smul.addr %s247, 8
        %s249 = scalar_lea.vmem [#allocation8], %s248
        %s250 = smul.u32 2, %s25
        %s251 = smul.u32 2, %s25
        %s252 = smul.u32 2, %s25
        %v254 = vld [vmem:[%s216] sm:$0xf]
        %v255 = vld [vmem:[%s216 + $0x4] sm:$0xf]
        %v256 = vld [vmem:[#allocation5] sm:$0xf]
        %v257 = vld [vmem:[#allocation5 + $0x4] sm:$0xf]
        %v258 = vld [vmem:[#allocation5 + $0x8] sm:$0xf]
        %v259 = vld [vmem:[#allocation5 + $0xc] sm:$0xf]
        %v260 = vld [vmem:[#allocation5 + $0x10] sm:$0xf]
        %v261 = vld [vmem:[#allocation5 + $0x14] sm:$0xf]
        %v262 = vld [vmem:[#allocation7] sm:$0xf]
        %v263 = vld [vmem:[#allocation7 + $0x4] sm:$0xf]
        %v264 = vunpack.c.l.bf16 %v262
        %v265 = vunpack.c.l.bf16 %v263
        %v268 = vunpack.c.l.b16 %v254
        %v269 = vunpack.c.l.b16 %v255
        %v270 = vpack.c.b16 %v269, %v268
        %v277 = vunpack.c.l.b16 %v256
        %v278 = vunpack.c.l.b16 %v257
        %v279 = vunpack.c.l.b16 %v258
        %v280 = vunpack.c.l.b16 %v259
        %v281 = vunpack.c.l.b16 %v260
        %v282 = vunpack.c.l.b16 %v261
        %v283 = vpack.c.b16 %v278, %v277
        %v284 = vpack.c.b16 %v280, %v279
        %v285 = vpack.c.b16 %v282, %v281
        %vm289 = vcmask 392192
        %v291 = vsel %vm289, %v270, 0
        %293 = vmatpush.bf16.msra.mxu0 0
        %294 = vmatpush.bf16.msra.mxu0 0
        %295 = vmatpush.bf16.msra.mxu0 0
        %296 = vmatpush.bf16.msra.mxu0 0
        %297 = vmatpush.bf16.msra.mxu0 0
        %298 = vmatpush.bf16.msra.mxu0 %v285
        %299 = vmatpush.bf16.msra.mxu0 %v284
        %300 = vmatpush.bf16.msra.mxu0 %v283
        %301 = vmatmul.bf16.gmra.mxu0 %v291
        %v302 = vpop.f32.mrf.mxu0
        %v303 = vadd.f32 %v264, %v302
        %v304 = vpop.f32.mrf.mxu0
        %v305 = vadd.f32 %v265, %v304
        %306 = vdwg.mxu0
        %v307 = vpack.c.bf16 %v303, %v303
        %v308 = vpack.c.bf16 %v305, %v305
        %309 = vst [vmem:[%s249] sm:$0xf] %v307
        %310 = vst [vmem:[%s249 + $0x4] sm:$0xf] %v308
        %s311 = sand.u32 %s118, 1
        %s312 = scalar_lea.sflag [#allocation4], %s311
        %s313 = sand.u32 %s118, 1
        %s314 = smul.addr %s313, 8
        %s315 = scalar_lea.vmem [#allocation8], %s314
        // Predicated region
        $region45: #{tpu_custom_call.1} parent=31 // pred_check
          %p316 = pneg %p128
        $region46: #{tpu_custom_call.1} parent=31 // pred_check_branch
          %318 = sbr.rel (%p316) target = $region48
        $region47: #{tpu_custom_call.1} parent=31 // pred_region
          %s319 = smul.u32 2, %s25
          %321 = vsyncadd %s312, 0
          %s322 = smul.addr %s26, 2
          %s323 = sadd.s32 %s319, %s322
          %s324 = smul.addr %s323, 4
          %s325 = scalar_lea.hbm %s3, %s324
          %s326 = sshll.u32 %s315, 4
          %s327 = int_to_ptr.vmem [resolvable:$true] %s326
          %s328 = sshll.u32 %s325, 4
          %s329 = int_to_ptr.hbm [resolvable:$true] %s328
          %334 = dma.vmem_to_hbm [thread:$0]  %s327, 128, %s329, %s312, 64, 64, 4
        $region48: #{tpu_custom_call.1} parent=31 // pred_fallthru
          _
      $region32: #{tpu_custom_call.1} parent=5 // pred_fallthru
        _
      %p335 = scmp.le.s32.totalorder 2, %s16
      // Predicated region
      $region49: #{tpu_custom_call.1} parent=5 // pred_check
        %p336 = pneg %p335
      $region50: #{tpu_custom_call.1} parent=5 // pred_check_branch
        %338 = sbr.rel (%p336) target = $region52
      $region51: #{tpu_custom_call.1} parent=5 // pred_region
        %s339 = ssub.s32 %s16, 2
        // Predicated region
        $region53: #{tpu_custom_call.1} parent=51 // pred_check
          %p340 = pneg %p134
        $region54: #{tpu_custom_call.1} parent=51 // pred_check_branch
          %342 = sbr.rel (%p340) target = $region56
        $region55: #{tpu_custom_call.1} parent=51 // pred_region
          %s343 = sand.u32 %s119, 1
          %s344 = scalar_lea.sflag [#allocation4], %s343
          %s345 = sand.u32 %s119, 1
          %s346 = smul.addr %s345, 8
          %s347 = scalar_lea.vmem [#allocation8], %s346
          %349 = dma.done %s344, 128
        $region56: #{tpu_custom_call.1} parent=51 // pred_fallthru
          _
      $region52: #{tpu_custom_call.1} parent=5 // pred_fallthru
        _
    $region6: #{tpu_custom_call.1} parent=1 // loop_footer
      %s20 = sadd.s32 1, %s16
    $region7: #{tpu_custom_call.1} parent=1 // loop_footer_branch
      %15 = sbr.rel target = $region3
    $region8: #{tpu_custom_call.1} parent=1 // loop_exit
      _
    %350 = vsyncpa [#allocation3], 1
    %s351 = scalar_lea.sflag [#allocation3], 1
    %352 = vsyncpa %s351, 1
    %353 = vsyncpa [#allocation6], 1
    %354 = vsyncpa [#allocation4], 1
    %s355 = scalar_lea.sflag [#allocation4], 1
    %356 = vsyncpa %s355, 1

</llo_original>
